<compile_context>
chip_gen: v6e
topology: v6e:2x2x1
jax: 0.10.0
libtpu: 0.0.40
codegen_flags: <defaults>
</compile_context>

<pallas_src>
import functools
import math

import jax
import jax.numpy as jnp
from jax.experimental import pallas as pl
from jax.experimental.pallas import tpu as pltpu

# ----------------------------------------------------------------------------
# MobileNetV3-small feature config: (in_c, kernel, exp_c, out_c, use_se, act, stride)
MBV3_SMALL_CFG = [
    (16, 3, 16, 16, True,  "relu",      2),
    (16, 3, 72, 24, False, "relu",      2),
    (24, 3, 88, 24, False, "relu",      1),
    (24, 5, 96, 40, True,  "hardswish", 2),
    (40, 5, 240, 40, True, "hardswish", 1),
    (40, 5, 240, 40, True, "hardswish", 1),
    (40, 5, 120, 48, True, "hardswish", 1),
    (48, 5, 144, 48, True, "hardswish", 1),
    (48, 5, 288, 96, True, "hardswish", 2),
    (96, 5, 576, 96, True, "hardswish", 1),
    (96, 5, 576, 96, True, "hardswish", 1),
]


def _round_up(v, m):
    return -(-v // m) * m


def _make_divisible(v, divisor=8):
    new_v = max(divisor, int(v + divisor / 2) // divisor * divisor)
    if new_v < 0.9 * v:
        new_v += divisor
    return new_v


def _apply_act(y, act):
    if act == "relu":
        return jnp.maximum(y, 0.0)
    if act == "hardswish":
        return y * jnp.clip(y + 3.0, 0.0, 6.0) * (1.0 / 6.0)
    if act == "hardsigmoid":
        return jnp.clip(y + 3.0, 0.0, 6.0) * (1.0 / 6.0)
    return y


def _pad2d(a, m0, m1):
    return jnp.pad(a, ((0, m0 - a.shape[0]), (0, m1 - a.shape[1])))


# ----------------------------------------------------------------------------
# Pallas kernel 1: single-K-step GEMM with fused per-channel affine, optional
# fused residual add, and activation.  Inputs bf16, accumulation/epilogue f32.
def _gemm_kernel(x_ref, w_ref, scale_ref, shift_ref, *rest, act, has_res):
    if has_res:
        res_ref, o_ref = rest
    else:
        (o_ref,) = rest
    y = jnp.dot(x_ref[...], w_ref[...], preferred_element_type=jnp.float32)
    y = y * scale_ref[...] + shift_ref[...]
    if has_res:
        y = y + res_ref[...]
    o_ref[...] = _apply_act(y, act)


def matmul_affine_act(x, w, scale, shift, act="none", residual=None):
    """out = act((x @ w) * scale + shift [+ residual]); scale/shift per column."""
    M, K = x.shape
    K2, N = w.shape
    assert K == K2 and K <= 1024          # every GEMM in this net has K <= 576
    tm = min(_round_up(M, 8), 256)
    Mp = _round_up(M, tm)
    Np = _round_up(N, 128)
    tn = 256 if Np % 256 == 0 else 128

    xp = _pad2d(x, Mp, K).astype(jnp.bfloat16)
    wp = _pad2d(w.astype(jnp.bfloat16), K, Np)
    sp = _pad2d(scale.reshape(1, N).astype(jnp.float32), 1, Np)
    bp = _pad2d(shift.reshape(1, N).astype(jnp.float32), 1, Np)

    in_specs = [
        pl.BlockSpec((tm, K), lambda i, j: (i, 0)),
        pl.BlockSpec((K, tn), lambda i, j: (0, j)),
        pl.BlockSpec((1, tn), lambda i, j: (0, j)),
        pl.BlockSpec((1, tn), lambda i, j: (0, j)),
    ]
    args = [xp, wp, sp, bp]
    has_res = residual is not None
    if has_res:
        rp = _pad2d(residual.astype(jnp.float32), Mp, Np)
        in_specs.append(pl.BlockSpec((tm, tn), lambda i, j: (i, j)))
        args.append(rp)

    out = pl.pallas_call(
        functools.partial(_gemm_kernel, act=act, has_res=has_res),
        out_shape=jax.ShapeDtypeStruct((Mp, Np), jnp.float32),
        grid=(Mp // tm, Np // tn),
        in_specs=in_specs,
        out_specs=pl.BlockSpec((tm, tn), lambda i, j: (i, j)),
        compiler_params=pltpu.CompilerParams(
            dimension_semantics=("parallel", "parallel")),
    )(*args)
    return out[:M, :N]


def conv1x1_bn_act(x, w2d, scale, shift, act, residual=None):
    N, H, W, C = x.shape
    Cout = w2d.shape[1]
    res = residual.reshape(N * H * W, Cout) if residual is not None else None
    out = matmul_affine_act(x.reshape(N * H * W, C), w2d, scale, shift, act,
                            residual=res)
    return out.reshape(N, H, W, Cout)


# ----------------------------------------------------------------------------
# Pallas kernel 2: tap-accumulation spatial conv (stride 1).
# The padded feature map lives flattened (rows = h*Wp + w) in VMEM; each tap is
# a static row-offset slice matmul'd against its (Cin, tn) weight slab.
# Used for the fused head 3x3 conv and the sub-pixel deconvs (where the 4
# output parities are mapped onto the output-channel grid axis).
def _tap_conv_kernel(x_ref, w_ref, scale_ref, shift_ref, o_ref, acc_ref, *,
                     offsets, mext, act):
    for t, off in enumerate(offsets):
        lhs = x_ref[0, 0, off:off + mext, :]
        contrib = jnp.dot(lhs, w_ref[t], preferred_element_type=jnp.float32)
        if t == 0:
            acc_ref[...] = contrib
        else:
            acc_ref[...] += contrib
    y = acc_ref[...] * scale_ref[...] + shift_ref[...]
    o_ref[0] = _apply_act(y, act)


def _tap_conv_call(xf, w_taps, scale, shift, *, offsets, mext, tn, act,
                   phase_mode):
    # xf: (N, P, R, Cin) bf16; w_taps: (T, Cin, Coutp) bf16
    N, P, R, Cin = xf.shape
    T, _, Coutp = w_taps.shape
    assert T == len(offsets) and Coutp % tn == 0
    n_tiles = Coutp // tn
    if phase_mode:
        assert P == n_tiles
        x_map = lambda n, j: (n, j, 0, 0)
    else:
        x_map = lambda n, j: (n, 0, 0, 0)

    out = pl.pallas_call(
        functools.partial(_tap_conv_kernel, offsets=tuple(offsets), mext=mext,
                          act=act),
        out_shape=jax.ShapeDtypeStruct((N, mext, Coutp), jnp.float32),
        grid=(N, n_tiles),
        in_specs=[
            pl.BlockSpec((1, 1, R, Cin), x_map),
            pl.BlockSpec((T, Cin, tn), lambda n, j: (0, 0, j)),
            pl.BlockSpec((1, tn), lambda n, j: (0, j)),
            pl.BlockSpec((1, tn), lambda n, j: (0, j)),
        ],
        out_specs=pl.BlockSpec((1, mext, tn), lambda n, j: (n, 0, j)),
        scratch_shapes=[pltpu.VMEM((mext, tn), jnp.float32)],
        compiler_params=pltpu.CompilerParams(
            dimension_semantics=("parallel", "parallel")),
    )(xf, w_taps,
      scale.reshape(1, Coutp).astype(jnp.float32),
      shift.reshape(1, Coutp).astype(jnp.float32))
    return out


def conv_tap_bn_act(x, w_taps, scale, shift, kh, kw, pad, act):
    """Regular stride-1 conv; w_taps pre-packed as (kh*kw, Cin, Coutp) bf16."""
    N, H, W, Cin = x.shape
    T, Cin2, Coutp = w_taps.shape
    assert T == kh * kw and Cin2 == Cin
    Hp, Wp = H + 2 * pad, W + 2 * pad
    Ho, Wo = Hp - kh + 1, Wp - kw + 1
    xq = jnp.pad(x, ((0, 0), (pad, pad), (pad, pad), (0, 0)))
    xf = xq.reshape(N, Hp * Wp, Cin)
    xf = jnp.pad(xf, ((0, 0), (0, Wp), (0, 0)))          # overrun guard row
    xf = xf.reshape(N, 1, (Hp + 1) * Wp, Cin).astype(jnp.bfloat16)
    mext = Ho * Wp
    offsets = [dy * Wp + dx for dy in range(kh) for dx in range(kw)]
    tn = 256 if Coutp % 256 == 0 else 128
    out_ext = _tap_conv_call(xf, w_taps, scale, shift, offsets=offsets,
                             mext=mext, tn=tn, act=act, phase_mode=False)
    return out_ext.reshape(N, Ho, Wp, Coutp)[:, :, :Wo, :]


def deconv_subpixel_bn_relu(x, w_taps, scale, shift):
    """ConvTranspose2d(k=4, s=2, p=1, bias=False) + BN + ReLU, sub-pixel form.

    Each output parity (rh, rw) is a 2x2 stride-1 conv on a differently padded
    copy of the (un-dilated) input; all four parities run in one Pallas call.
    """
    N, H, W, Cin = x.shape
    T, Cin2, Coutp4 = w_taps.shape
    assert T == 4 and Cin2 == Cin and Coutp4 % 4 == 0
    Cout = Coutp4 // 4
    assert Cout % 128 == 0
    Hq, Wq = H + 1, W + 1
    mext = H * Wq

    phs = []
    for rh in (0, 1):
        for rw in (0, 1):
            xp = jnp.pad(x, ((0, 0), (1 - rh, rh), (1 - rw, rw), (0, 0)))
            xp = xp.reshape(N, Hq * Wq, Cin)
            xp = jnp.pad(xp, ((0, 0), (0, Wq), (0, 0)))  # overrun guard row
            phs.append(xp)
    xf = jnp.stack(phs, axis=1).astype(jnp.bfloat16)      # (N, 4, (Hq+1)*Wq, Cin)

    offsets = [dh * Wq + dw for dh in (0, 1) for dw in (0, 1)]
    scale4 = jnp.tile(scale, 4)
    shift4 = jnp.tile(shift, 4)
    out_ext = _tap_conv_call(xf, w_taps, scale4, shift4, offsets=offsets,
                             mext=mext, tn=Cout, act="relu", phase_mode=True)
    # (N, H*Wq, 4*Cout) -> interleave the 4 parities into (N, 2H, 2W, Cout)
    y = out_ext.reshape(N, H, Wq, 2, 2, Cout)[:, :, :W]
    y = jnp.transpose(y, (0, 1, 3, 2, 4, 5)).reshape(N, 2 * H, 2 * W, Cout)
    return y


# ----------------------------------------------------------------------------
# Pallas kernel 3: depthwise conv + fused BN/act.  Stride-2 blocks are handled
# by a space-to-depth phase split in glue so all in-kernel slices are static
# stride-1 (no 4x over-compute, no subsample afterwards).
def _dwconv_kernel(x_ref, w_ref, scale_ref, shift_ref, o_ref, *, taps, act):
    x = x_ref[0]                       # (Hin, Wq, C)
    w = w_ref[...]                     # (kh, kw, C)
    Ho, Wo = o_ref.shape[1], o_ref.shape[2]
    acc = jnp.zeros((Ho, Wo, x.shape[-1]), jnp.float32)
    for (r0, c0, dy, dx) in taps:
        acc = acc + x[r0:r0 + Ho, c0:c0 + Wo, :] * w[dy, dx, :]
    y = acc * scale_ref[0] + shift_ref[0]
    o_ref[0] = _apply_act(y, act)


def depthwise_conv_bn_act(x, w, scale, shift, stride, pad, act):
    N, H, W, C = x.shape
    kh, kw = w.shape[0], w.shape[1]
    Ho = (H + 2 * pad - kh) // stride + 1
    Wo = (W + 2 * pad - kw) // stride + 1
    if stride == 1:
        xin = jnp.pad(x, ((0, 0), (pad, pad), (pad, pad), (0, 0)))
        Wq = W + 2 * pad
        taps = tuple((dy, dx, dy, dx) for dy in range(kh) for dx in range(kw))
    else:
        assert stride == 2
        Hq = (kh - 1) // 2 + Ho
        Wq = (kw - 1) // 2 + Wo
        bot, right = 2 * Hq - H - pad, 2 * Wq - W - pad
        assert bot >= 0 and right >= 0
        xp = jnp.pad(x, ((0, 0), (pad, bot), (pad, right), (0, 0)))
        phases = [xp[:, py::2, px::2, :] for py in (0, 1) for px in (0, 1)]
        xin = jnp.concatenate(phases, axis=1)             # (N, 4*Hq, Wq, C)
        taps = tuple((((dy % 2) * 2 + (dx % 2)) * Hq + dy // 2, dx // 2, dy, dx)
                     for dy in range(kh) for dx in range(kw))
    Hin = xin.shape[1]
    out = pl.pallas_call(
        functools.partial(_dwconv_kernel, taps=taps, act=act),
        out_shape=jax.ShapeDtypeStruct((N, Ho, Wo, C), jnp.float32),
        grid=(N,),
        in_specs=[
            pl.BlockSpec((1, Hin, Wq, C), lambda n: (n, 0, 0, 0)),
            pl.BlockSpec((kh, kw, C), lambda n: (0, 0, 0)),
            pl.BlockSpec((1, C), lambda n: (0, 0)),
            pl.BlockSpec((1, C), lambda n: (0, 0)),
        ],
        out_specs=pl.BlockSpec((1, Ho, Wo, C), lambda n: (n, 0, 0, 0)),
        compiler_params=pltpu.CompilerParams(dimension_semantics=("parallel",)),
    )(xin, w, scale.reshape(1, C), shift.reshape(1, C))
    return out


# ----------------------------------------------------------------------------
# Glue
def _im2col(x, kh, kw, stride, pad):
    # TODO(synk): the stride-2 stem (Cin=3) stays on this tiny im2col + GEMM
    # path; its patch matrix is <0.5 MB so in-kernel tap accumulation with a
    # strided input decomposition is not worth the extra machinery here.
    N, H, W, C = x.shape
    xp = jnp.pad(x, ((0, 0), (pad, pad), (pad, pad), (0, 0)))
    Ho = (H + 2 * pad - kh) // stride + 1
    Wo = (W + 2 * pad - kw) // stride + 1
    cols = []
    for i in range(kh):
        for j in range(kw):
            cols.append(xp[:, i:i + (Ho - 1) * stride + 1:stride,
                           j:j + (Wo - 1) * stride + 1:stride, :])
    patches = jnp.stack(cols, axis=3)
    return patches.reshape(N * Ho * Wo, kh * kw * C), (N, Ho, Wo)


def se_block(x, w1, b1, w2, b2):
    # Tiny FCs (M == batch) intentionally left in plain JAX/XLA: a tiled MXU
    # GEMM would waste >95% of its rows and add two launches per block.
    pooled = jnp.mean(x, axis=(1, 2))
    s = jnp.maximum(pooled @ w1 + b1, 0.0)
    s = jnp.clip(s @ w2 + b2 + 3.0, 0.0, 6.0) * (1.0 / 6.0)
    return x * s[:, None, None, :]


def inverted_residual(x, p, cfg):
    in_c, k, exp_c, out_c, use_se, act, stride = cfg
    inp = x
    y = x
    if exp_c != in_c:
        y = conv1x1_bn_act(y, p["exp_w2d"], p["exp_s"], p["exp_sh"], act)
    y = depthwise_conv_bn_act(y, p["dw_w"], p["dw_s"], p["dw_sh"], stride,
                              (k - 1) // 2, act)
    if use_se:
        y = se_block(y, p["se_w1"], p["se_b1"], p["se_w2"], p["se_b2"])
    res = inp if (stride == 1 and in_c == out_c) else None   # fused into GEMM
    y = conv1x1_bn_act(y, p["proj_w2d"], p["proj_s"], p["proj_sh"], "none",
                       residual=res)
    return y


# ----------------------------------------------------------------------------
# Deterministic synthetic parameters (same shapes the PyTorch module builds)
def init_params(key, heads, head_conv):
    kit = iter(jax.random.split(key, 512))

    def nk():
        return next(kit)

    def winit(shape):
        fan_in = 1
        for d in shape[:-1]:
            fan_in *= d
        return jax.random.normal(nk(), shape, jnp.float32) / math.sqrt(fan_in)

    def bninit(c, eps=1e-5):
        g = 1.0 + 0.02 * jax.random.normal(nk(), (c,), jnp.float32)
        b = 0.02 * jax.random.normal(nk(), (c,), jnp.float32)
        mean = 0.02 * jax.random.normal(nk(), (c,), jnp.float32)
        var = 1.0 + 0.02 * jnp.abs(jax.random.normal(nk(), (c,), jnp.float32))
        scale = g * jax.lax.rsqrt(var + eps)
        shift = b - mean * scale
        return scale, shift

    params = {}
    params["stem"] = {"w": winit((3, 3, 3, 16))}
    params["stem"]["scale"], params["stem"]["shift"] = bninit(16)

    blocks = []
    for (in_c, k, exp_c, out_c, use_se, act, stride) in MBV3_SMALL_CFG:
        p = {}
        if exp_c != in_c:
            p["exp_w"] = winit((1, 1, in_c, exp_c))
            p["exp_s"], p["exp_sh"] = bninit(exp_c)
        p["dw_w"] = winit((k, k, exp_c))
        p["dw_s"], p["dw_sh"] = bninit(exp_c)
        if use_se:
            sq = _make_divisible(exp_c // 4, 8)
            p["se_w1"] = winit((exp_c, sq))
            p["se_b1"] = jnp.zeros((sq,), jnp.float32)
            p["se_w2"] = winit((sq, exp_c))
            p["se_b2"] = jnp.zeros((exp_c,), jnp.float32)
        p["proj_w"] = winit((1, 1, exp_c, out_c))
        p["proj_s"], p["proj_sh"] = bninit(out_c)
        blocks.append(p)
    params["blocks"] = blocks

    params["last"] = {"w": winit((1, 1, 96, 576))}
    params["last"]["scale"], params["last"]["shift"] = bninit(576)

    deconvs = []
    inp = 576
    for planes in (256, 256, 256):
        wt = winit((inp, planes, 4, 4))      # PyTorch (Cin, Cout, kh, kw)
        s, b = bninit(planes)
        deconvs.append({"wt": wt, "scale": s, "shift": b})
        inp = planes
    params["deconv"] = deconvs

    hp = {}
    for head in sorted(heads):
        n_out = heads[head]
        bias_final = jnp.full((n_out,), -2.19, jnp.float32) if "hm" in head \
            else jnp.zeros((n_out,), jnp.float32)
        if head_conv > 0:
            hp[head] = {
                "w1": winit((3, 3, 256, head_conv)),
                "b1": jnp.zeros((head_conv,), jnp.float32),
                "w2": winit((1, 1, head_conv, n_out)),
                "b2": bias_final,
            }
        else:
            hp[head] = {"w2": winit((1, 1, 256, n_out)), "b2": bias_final}
    params["heads"] = hp
    return params


def pack_params(params, heads, head_conv):
    """One-time weight packing: bf16 casts, 1x1 reshape, deconv phase weights,
    fused head weights (done once instead of on every forward)."""
    pk = {}
    st = params["stem"]
    pk["stem"] = {"w2d": st["w"].reshape(27, 16).astype(jnp.bfloat16),
                  "scale": st["scale"], "shift": st["shift"]}

    blocks = []
    for cfg, p in zip(MBV3_SMALL_CFG, params["blocks"]):
        in_c, k, exp_c, out_c, use_se, act, stride = cfg
        q = {"dw_w": p["dw_w"], "dw_s": p["dw_s"], "dw_sh": p["dw_sh"]}
        if exp_c != in_c:
            q["exp_w2d"] = p["exp_w"].reshape(in_c, exp_c).astype(jnp.bfloat16)
            q["exp_s"], q["exp_sh"] = p["exp_s"], p["exp_sh"]
        if use_se:
            q["se_w1"], q["se_b1"] = p["se_w1"], p["se_b1"]
            q["se_w2"], q["se_b2"] = p["se_w2"], p["se_b2"]
        q["proj_w2d"] = p["proj_w"].reshape(exp_c, out_c).astype(jnp.bfloat16)
        q["proj_s"], q["proj_sh"] = p["proj_s"], p["proj_sh"]
        blocks.append(q)
    pk["blocks"] = blocks

    lt = params["last"]
    pk["last"] = {"w2d": lt["w"].reshape(96, 576).astype(jnp.bfloat16),
                  "scale": lt["scale"], "shift": lt["shift"]}

    deconvs = []
    for dp in params["deconv"]:
        wt = dp["wt"]
        cin, cout = wt.shape[0], wt.shape[1]
        # equivalent regular-conv weight (spatial flip, (Cin,Cout) last)
        wconv = jnp.transpose(wt[:, :, ::-1, ::-1], (2, 3, 0, 1))   # (4,4,Cin,Cout)
        cols = []
        for rh in (0, 1):
            for rw in (0, 1):                 # phase p = 2*rh + rw
                cols.append(wconv[rh::2, rw::2].reshape(4, cin, cout))
        w_taps = jnp.concatenate(cols, axis=-1).astype(jnp.bfloat16)  # (4,Cin,4*Cout)
        deconvs.append({"w_taps": w_taps, "scale": dp["scale"], "shift": dp["shift"]})
    pk["deconv"] = deconvs

    names = sorted(heads)
    hp = params["heads"]
    slices, off = {}, 0
    for nm in names:
        slices[nm] = (off, off + heads[nm])
        off += heads[nm]
    total_out = off
    hd = {"slices": slices}
    if head_conv > 0:
        hc = head_conv
        total_hc = len(names) * hc
        thp = _round_up(total_hc, 128)
        w1 = jnp.concatenate([hp[nm]["w1"] for nm in names], axis=-1)
        w1 = jnp.pad(w1, ((0, 0), (0, 0), (0, 0), (0, thp - total_hc)))
        hd["w1_taps"] = w1.reshape(9, 256, thp).astype(jnp.bfloat16)
        hd["b1"] = jnp.pad(jnp.concatenate([hp[nm]["b1"] for nm in names]),
                           (0, thp - total_hc))
        hd["s1"] = jnp.ones((thp,), jnp.float32)
        w2 = jnp.zeros((thp, total_out), jnp.float32)
        b2 = jnp.zeros((total_out,), jnp.float32)
        for i, nm in enumerate(names):
            c0, c1 = slices[nm]
            w2 = w2.at[i * hc:(i + 1) * hc, c0:c1].set(
                hp[nm]["w2"].reshape(hc, heads[nm]))
            b2 = b2.at[c0:c1].set(hp[nm]["b2"])
        hd["w2_block"] = w2.astype(jnp.bfloat16)
        hd["b2"] = b2
        hd["s2"] = jnp.ones((total_out,), jnp.float32)
    else:
        w2 = jnp.concatenate([hp[nm]["w2"].reshape(256, heads[nm]) for nm in names],
                             axis=-1)
        hd["w2_block"] = w2.astype(jnp.bfloat16)
        hd["b2"] = jnp.concatenate([hp[nm]["b2"] for nm in names])
        hd["s2"] = jnp.ones((total_out,), jnp.float32)
    pk["heads"] = hd
    return pk


# ----------------------------------------------------------------------------
def forward(params, x_nchw, heads, head_conv):
    x = jnp.transpose(x_nchw, (0, 2, 3, 1)).astype(jnp.float32)   # NCHW -> NHWC

    st = params["stem"]
    cols, (N, Ho, Wo) = _im2col(x, 3, 3, 2, 1)
    x = matmul_affine_act(cols, st["w2d"], st["scale"], st["shift"], "hardswish")
    x = x.reshape(N, Ho, Wo, 16)

    for cfg, bp in zip(MBV3_SMALL_CFG, params["blocks"]):
        x = inverted_residual(x, bp, cfg)

    lt = params["last"]
    x = conv1x1_bn_act(x, lt["w2d"], lt["scale"], lt["shift"], "hardswish")

    for dp in params["deconv"]:
        x = deconv_subpixel_bn_relu(x, dp["w_taps"], dp["scale"], dp["shift"])

    hd = params["heads"]
    Nb, Hf, Wf, _ = x.shape
    if head_conv > 0:
        y = conv_tap_bn_act(x, hd["w1_taps"], hd["s1"], hd["b1"],
                            kh=3, kw=3, pad=1, act="relu")
    else:
        y = x
    M = Nb * Hf * Wf
    out = matmul_affine_act(y.reshape(M, y.shape[-1]), hd["w2_block"],
                            hd["s2"], hd["b2"], "none")
    out = out.reshape(Nb, Hf, Wf, -1)

    ret = {}
    for name in heads:
        c0, c1 = hd["slices"][name]
        ret[name] = jnp.transpose(out[..., c0:c1], (0, 3, 1, 2))   # back to NCHW
    return ret


if __name__ == "__main__":
    heads = {"hm": 3, "wh": 2}
    head_conv = 64

    key = jax.random.PRNGKey(0)
    pkey, xkey = jax.random.split(key)
    raw_params = init_params(pkey, heads, head_conv)
    params = pack_params(raw_params, heads, head_conv)

    x = jax.random.normal(xkey, (2, 3, 64, 64), jnp.float32)   # NCHW input

    out = forward(params, x, heads, head_conv)
    out = jax.tree_util.tree_map(jax.block_until_ready, out)

    for h in heads:
        assert out[h].shape == (2, heads[h], 16, 16), out[h].shape
        assert bool(jnp.all(jnp.isfinite(out[h])))
    print("KERNEL_OK")
</pallas_src>

<mosaic_0001>
module attributes {stable_mosaic.version = 11 : i64} {
  func.func @_gemm_kernel(%arg0: i32, %arg1: i32, %arg2: memref<256x27xbf16, #tpu.memory_space<vmem>>, %arg3: memref<27x128xbf16, #tpu.memory_space<vmem>>, %arg4: memref<1x128xf32, #tpu.memory_space<vmem>>, %arg5: memref<1x128xf32, #tpu.memory_space<vmem>>, %arg6: memref<256x128xf32, #tpu.memory_space<vmem>>) attributes {dimension_semantics = [#tpu.dimension_semantics<parallel>, #tpu.dimension_semantics<parallel>], iteration_bounds = array<i64: 8, 1>, scalar_prefetch = 0 : i64, scratch_operands = 0 : i64, tpu.core_type = #tpu.core_type<tc>, window_params = [{transform_indices = @transform_0, window_bounds = array<i64: 256, 27>}, {transform_indices = @transform_1, window_bounds = array<i64: 27, 128>}, {transform_indices = @transform_2, window_bounds = array<i64: 1, 128>}, {transform_indices = @transform_3, window_bounds = array<i64: 1, 128>}, {transform_indices = @transform_4, window_bounds = array<i64: 256, 128>}]} {
    %c0 = arith.constant 0 : index
    %c0_0 = arith.constant 0 : index
    %0 = vector.load %arg2[%c0, %c0_0] : memref<256x27xbf16, #tpu.memory_space<vmem>>, vector<256x27xbf16>
    %c0_1 = arith.constant 0 : index
    %c0_2 = arith.constant 0 : index
    %1 = vector.load %arg3[%c0_1, %c0_2] : memref<27x128xbf16, #tpu.memory_space<vmem>>, vector<27x128xbf16>
    %cst = arith.constant dense<0.000000e+00> : vector<256x128xf32>
    %2 = tpu.matmul %0, %1, %cst {dimension_numbers = #tpu.dot_dimension_numbers<[1], [0], [0], [1], [0, 0, 1, 1], [], []>} : vector<256x27xbf16>, vector<27x128xbf16>, vector<256x128xf32> -> vector<256x128xf32>
    %c0_3 = arith.constant 0 : index
    %c0_4 = arith.constant 0 : index
    %3 = vector.load %arg4[%c0_3, %c0_4] : memref<1x128xf32, #tpu.memory_space<vmem>>, vector<1x128xf32>
    %4 = vector.broadcast %3 : vector<1x128xf32> to vector<256x128xf32>
    %5 = arith.mulf %2, %4 : vector<256x128xf32>
    %c0_5 = arith.constant 0 : index
    %c0_6 = arith.constant 0 : index
    %6 = vector.load %arg5[%c0_5, %c0_6] : memref<1x128xf32, #tpu.memory_space<vmem>>, vector<1x128xf32>
    %7 = vector.broadcast %6 : vector<1x128xf32> to vector<256x128xf32>
    %8 = arith.addf %5, %7 : vector<256x128xf32>
    %cst_7 = arith.constant 3.000000e+00 : f32
    %9 = vector.broadcast %cst_7 : f32 to vector<256x128xf32>
    %10 = arith.addf %8, %9 : vector<256x128xf32>
    %cst_8 = arith.constant 0.000000e+00 : f32
    %cst_9 = arith.constant 6.000000e+00 : f32
    %11 = vector.broadcast %cst_8 : f32 to vector<256x128xf32>
    %12 = arith.maximumf %11, %10 : vector<256x128xf32>
    %13 = vector.broadcast %cst_9 : f32 to vector<256x128xf32>
    %14 = arith.minimumf %13, %12 : vector<256x128xf32>
    %15 = arith.mulf %8, %14 : vector<256x128xf32>
    %cst_10 = arith.constant 0.166666672 : f32
    %16 = vector.broadcast %cst_10 : f32 to vector<256x128xf32>
    %17 = arith.mulf %15, %16 : vector<256x128xf32>
    %c0_11 = arith.constant 0 : index
    %c0_12 = arith.constant 0 : index
    %18 = vector.load %arg6[%c0_11, %c0_12] : memref<256x128xf32, #tpu.memory_space<vmem>>, vector<256x128xf32>
    tpu.vector_store %arg6[%c0_11, %c0_12], %17 {strides = array<i32>} : memref<256x128xf32, #tpu.memory_space<vmem>>, vector<256x128xf32>,
    return
  }
  func.func @transform_0(%arg0: i32, %arg1: i32) -> (i32, i32) {
    %c0_i32 = arith.constant 0 : i32
    %c0_i32_0 = arith.constant 0 : i32
    return %arg0, %c0_i32 : i32, i32
  }
  func.func @transform_1(%arg0: i32, %arg1: i32) -> (i32, i32) {
    %c0_i32 = arith.constant 0 : i32
    %c0_i32_0 = arith.constant 0 : i32
    return %c0_i32, %arg1 : i32, i32
  }
  func.func @transform_2(%arg0: i32, %arg1: i32) -> (i32, i32) {
    %c0_i32 = arith.constant 0 : i32
    %c0_i32_0 = arith.constant 0 : i32
    return %c0_i32, %arg1 : i32, i32
  }
  func.func @transform_3(%arg0: i32, %arg1: i32) -> (i32, i32) {
    %c0_i32 = arith.constant 0 : i32
    %c0_i32_0 = arith.constant 0 : i32
    return %c0_i32, %arg1 : i32, i32
  }
  func.func @transform_4(%arg0: i32, %arg1: i32) -> (i32, i32) {
    %c0_i32 = arith.constant 0 : i32
    return %arg0, %arg1 : i32, i32
  }
}

</mosaic_0001>

<llo_original>
// kernel: tpu_custom_call.1
$region0: #{tpu_custom_call.1}
  #allocation0 [shape = 'u32[]', space=smem, size = 0x4, offset = 0x4, fixed_abs, tag = 'smem constant byte address 0x4 - core index']
  #allocation1 [shape = 'u32[144,128]{1,0:T(1,128)}', space=vmem, size = 0x12000, scoped, tag = 'internal scratch']
  %s0 = inlined_call_operand.vmem [shape: bf16[2048,27], index: 0, kind: input, shape index: {}]
  %s1 = inlined_call_operand.vmem [shape: bf16[27,128], index: 1, kind: input, shape index: {}]
  %s2 = inlined_call_operand.vmem [shape: f32[1,128], index: 2, kind: input, shape index: {}]
  %s3 = inlined_call_operand.vmem [shape: f32[1,128], index: 3, kind: input, shape index: {}]
  %s4 = inlined_call_operand.hbm [shape: f32[2048,128], index: 4, kind: output, shape index: {}]
  %s5 = sld [smem:[#allocation0]]
  $region49: #{tpu_custom_call.1} parent=0
    _
  %s7 = ssub.s32 1, %s5
  %s8 = scalar_select 0, %s7, %s5
  $region1: #{tpu_custom_call.1} parent=0
    #allocation2 [shape = 'u8[262144]{0}', space=vmem, size = 0x40000, scoped, tag = 'output window, operand 0']
    #allocation3 [shape = 's32[2]{0}', space=sflag, size = 0x8, scoped, tag = 'scoped memory for tpu_custom_call.1']
    %9 = vsyncpa [#allocation3], 0
    %s10 = scalar_lea.sflag [#allocation3], 1
    %11 = vsyncpa %s10, 0
    loop: start=0, step=1, limit=10
    $region2: #{tpu_custom_call.1} parent=1 // loop_pre_header
      _
    $region3: #{tpu_custom_call.1} parent=1 // loop_header
      %s13 = sphi 0, %s17
      %p14 = scmp.ge.s32.totalorder %s13, 10
      %s20 = sphi 0, %s32
      %s21 = sphi 0, %s28
      %s22 = sphi 0, %s20
      %s23 = sphi 0, %s21
      %s24 = sphi 0, %s22
      %s25 = sphi 0, %s23
      %s35 = sphi 0, %s37
      %s38 = sphi 0, %s35
      %s39 = sphi 0, %s38
      %s55 = sphi 0, %s39
      %s61 = sphi 0, %s63
      %s64 = sphi 0, %s61
      %s65 = sphi 0, %s64
      %s81 = sphi 0, %s65
      %s87 = sphi 0, %s89
      %s90 = sphi 0, %s87
      %s91 = sphi 0, %s90
      %s107 = sphi 0, %s91
      %s113 = sphi 0, %s115
      %s116 = sphi 0, %s113
      %s117 = sphi 0, %s116
      %s133 = sphi 0, %s117
      %s141 = sphi 0, %s143
      %s144 = sphi 0, %s141
      %s145 = sphi 0, %s144
      %s161 = sphi 0, %s145
    $region4: #{tpu_custom_call.1} parent=1 // loop_header_branch
      %16 = sbr.rel (%p14) target = $region8
    $region5: #{tpu_custom_call.1} parent=1 // loop_body
      %s18 = ssub.s32 %s13, 1
      %s19 = ssub.s32 %s13, 2
      %s26 = sadd.s32 1, %s21
      %p27 = scmp.ge.s32.totalorder %s26, 1
      %s28 = scalar_select %p27, 0, %s26
      %s29 = sadd.s32 1, %s20
      %s30 = scalar_select %p27, %s29, %s20
      %p31 = scmp.ge.s32.totalorder %s30, 8
      %s32 = scalar_select %p31, 0, %s30
      %s33 = ssub.s32 %s20, %s32
      %p34 = scmp.eq.s32.totalorder %s33, 0
      %s36 = sadd.s32 %s35, 1
      %s37 = scalar_select %p34, %s35, %s36
      %p40 = pneg %p34
      %p41 = scmp.eq.s32.totalorder %s13, 7
      %p42 = por %p40, %p41
      %p43 = scmp.ne.s32.totalorder %s35, %s38
      %p44 = scmp.eq.s32.totalorder %s13, 0
      %p45 = por %p43, %p44
      %p46 = scmp.ne.s32.totalorder %s35, %s38
      %p47 = scmp.eq.s32.totalorder %s18, 7
      %p48 = por %p46, %p47
      %p49 = scmp.ne.s32.totalorder %s38, %s39
      %p50 = scmp.eq.s32.totalorder %s18, 0
      %p51 = por %p49, %p50
      %p52 = scmp.ne.s32.totalorder %s38, %s39
      %p53 = scmp.eq.s32.totalorder %s19, 7
      %p54 = por %p52, %p53
      %p56 = scmp.ne.s32.totalorder %s39, %s55
      %p57 = scmp.eq.s32.totalorder %s19, 0
      %p58 = por %p56, %p57
      %s59 = ssub.s32 %s21, %s28
      %p60 = scmp.eq.s32.totalorder %s59, 0
      %s62 = sadd.s32 %s61, 1
      %s63 = scalar_select %p60, %s61, %s62
      %p66 = pneg %p60
      %p67 = scmp.eq.s32.totalorder %s13, 7
      %p68 = por %p66, %p67
      %p69 = scmp.ne.s32.totalorder %s61, %s64
      %p70 = scmp.eq.s32.totalorder %s13, 0
      %p71 = por %p69, %p70
      %p72 = scmp.ne.s32.totalorder %s61, %s64
      %p73 = scmp.eq.s32.totalorder %s18, 7
      %p74 = por %p72, %p73
      %p75 = scmp.ne.s32.totalorder %s64, %s65
      %p76 = scmp.eq.s32.totalorder %s18, 0
      %p77 = por %p75, %p76
      %p78 = scmp.ne.s32.totalorder %s64, %s65
      %p79 = scmp.eq.s32.totalorder %s19, 7
      %p80 = por %p78, %p79
      %p82 = scmp.ne.s32.totalorder %s65, %s81
      %p83 = scmp.eq.s32.totalorder %s19, 0
      %p84 = por %p82, %p83
      %s85 = ssub.s32 %s21, %s28
      %p86 = scmp.eq.s32.totalorder %s85, 0
      %s88 = sadd.s32 %s87, 1
      %s89 = scalar_select %p86, %s87, %s88
      %p92 = pneg %p86
      %p93 = scmp.eq.s32.totalorder %s13, 7
      %p94 = por %p92, %p93
      %p95 = scmp.ne.s32.totalorder %s87, %s90
      %p96 = scmp.eq.s32.totalorder %s13, 0
      %p97 = por %p95, %p96
      %p98 = scmp.ne.s32.totalorder %s87, %s90
      %p99 = scmp.eq.s32.totalorder %s18, 7
      %p100 = por %p98, %p99
      %p101 = scmp.ne.s32.totalorder %s90, %s91
      %p102 = scmp.eq.s32.totalorder %s18, 0
      %p103 = por %p101, %p102
      %p104 = scmp.ne.s32.totalorder %s90, %s91
      %p105 = scmp.eq.s32.totalorder %s19, 7
      %p106 = por %p104, %p105
      %p108 = scmp.ne.s32.totalorder %s91, %s107
      %p109 = scmp.eq.s32.totalorder %s19, 0
      %p110 = por %p108, %p109
      %s111 = ssub.s32 %s21, %s28
      %p112 = scmp.eq.s32.totalorder %s111, 0
      %s114 = sadd.s32 %s113, 1
      %s115 = scalar_select %p112, %s113, %s114
      %p118 = pneg %p112
      %p119 = scmp.eq.s32.totalorder %s13, 7
      %p120 = por %p118, %p119
      %p121 = scmp.ne.s32.totalorder %s113, %s116
      %p122 = scmp.eq.s32.totalorder %s13, 0
      %p123 = por %p121, %p122
      %p124 = scmp.ne.s32.totalorder %s113, %s116
      %p125 = scmp.eq.s32.totalorder %s18, 7
      %p126 = por %p124, %p125
      %p127 = scmp.ne.s32.totalorder %s116, %s117
      %p128 = scmp.eq.s32.totalorder %s18, 0
      %p129 = por %p127, %p128
      %p130 = scmp.ne.s32.totalorder %s116, %s117
      %p131 = scmp.eq.s32.totalorder %s19, 7
      %p132 = por %p130, %p131
      %p134 = scmp.ne.s32.totalorder %s117, %s133
      %p135 = scmp.eq.s32.totalorder %s19, 0
      %p136 = por %p134, %p135
      %s137 = ssub.s32 %s20, %s32
      %s138 = ssub.s32 %s21, %s28
      %s139 = sor.u32 %s137, %s138
      %p140 = scmp.eq.s32.totalorder %s139, 0
      %s142 = sadd.s32 %s141, 1
      %s143 = scalar_select %p140, %s141, %s142
      %p146 = pneg %p140
      %p147 = scmp.eq.s32.totalorder %s13, 7
      %p148 = por %p146, %p147
      %p149 = scmp.ne.s32.totalorder %s141, %s144
      %p150 = scmp.eq.s32.totalorder %s13, 0
      %p151 = por %p149, %p150
      %p152 = scmp.ne.s32.totalorder %s141, %s144
      %p153 = scmp.eq.s32.totalorder %s18, 7
      %p154 = por %p152, %p153
      %p155 = scmp.ne.s32.totalorder %s144, %s145
      %p156 = scmp.eq.s32.totalorder %s18, 0
      %p157 = por %p155, %p156
      %p158 = scmp.ne.s32.totalorder %s144, %s145
      %p159 = scmp.eq.s32.totalorder %s19, 7
      %p160 = por %p158, %p159
      %p162 = scmp.ne.s32.totalorder %s145, %s161
      %p163 = scmp.eq.s32.totalorder %s19, 0
      %p164 = por %p162, %p163
      %p165 = scmp.le.s32.totalorder 1, %s13
      %p166 = scmp.lt.s32.totalorder %s13, 9
      %p167 = pnand %p165, %p166
      %p168 = pneg %p167
      // Predicated region
      $region9: #{tpu_custom_call.1} parent=5 // pred_check
        _
      $region10: #{tpu_custom_call.1} parent=5 // pred_check_branch
        %170 = sbr.rel (%p167) target = $region12
      $region11: #{tpu_custom_call.1} parent=5 // pred_region
        %s171 = ssub.s32 %s13, 1
        // Predicated region
        $region13: #{tpu_custom_call.1} parent=11 // pred_check
          %p172 = pneg %p77
        $region14: #{tpu_custom_call.1} parent=11 // pred_check_branch
          %174 = sbr.rel (%p172) target = $region16
        $region15: #{tpu_custom_call.1} parent=11 // pred_region
          %p175 = scmp.lt.s32.totalorder %s23, 0
          %s176 = scalar_select %p175, %s23, 0
          %s177 = smul.addr %s176, 4
          %s178 = scalar_lea.vmem %s1, %s177
        $region16: #{tpu_custom_call.1} parent=11 // pred_fallthru
          _
        // Predicated region
        $region17: #{tpu_custom_call.1} parent=11 // pred_check
          %p179 = pneg %p103
        $region18: #{tpu_custom_call.1} parent=11 // pred_check_branch
          %181 = sbr.rel (%p179) target = $region20
        $region19: #{tpu_custom_call.1} parent=11 // pred_region
          %p182 = scmp.lt.s32.totalorder %s23, 0
          %s183 = scalar_select %p182, %s23, 0
          %s184 = scalar_lea.vmem %s2, %s183
        $region20: #{tpu_custom_call.1} parent=11 // pred_fallthru
          _
        // Predicated region
        $region21: #{tpu_custom_call.1} parent=11 // pred_check
          %p185 = pneg %p129
        $region22: #{tpu_custom_call.1} parent=11 // pred_check_branch
          %187 = sbr.rel (%p185) target = $region24
        $region23: #{tpu_custom_call.1} parent=11 // pred_region
          %p188 = scmp.lt.s32.totalorder %s23, 0
          %s189 = scalar_select %p188, %s23, 0
          %s190 = scalar_lea.vmem %s3, %s189
        $region24: #{tpu_custom_call.1} parent=11 // pred_fallthru
          _
      $region12: #{tpu_custom_call.1} parent=5 // pred_fallthru
        _
      %p191 = scmp.lt.s32.totalorder %s13, 8
      // Predicated region
      $region25: #{tpu_custom_call.1} parent=5 // pred_check
        %p192 = pneg %p191
      $region26: #{tpu_custom_call.1} parent=5 // pred_check_branch
        %194 = sbr.rel (%p192) target = $region28
      $region27: #{tpu_custom_call.1} parent=5 // pred_region
        // Predicated region
        $region29: #{tpu_custom_call.1} parent=27 // pred_check
          %p195 = pneg %p45
        $region30: #{tpu_custom_call.1} parent=27 // pred_check_branch
          %197 = sbr.rel (%p195) target = $region32
        $region31: #{tpu_custom_call.1} parent=27 // pred_region
          %s198 = smul.u32 32, %s20
          %p199 = scmp.lt.s32.totalorder %s198, 255
          %s200 = scalar_select %p199, %s198, 255
          %s201 = smul.addr %s200, 4
          %s202 = scalar_lea.vmem %s0, %s201
          %s203 = smul.u32 32, %s20
        $region32: #{tpu_custom_call.1} parent=27 // pred_fallthru
          _
      $region28: #{tpu_custom_call.1} parent=5 // pred_fallthru
        _
      %p204 = scmp.le.s32.totalorder 1, %s13
      %p205 = scmp.lt.s32.totalorder %s13, 9
      %p206 = pnand %p204, %p205
      %p207 = pneg %p206
      // Predicated region
      $region33: #{tpu_custom_call.1} parent=5 // pred_check
        _
      $region34: #{tpu_custom_call.1} parent=5 // pred_check_branch
        %209 = sbr.rel (%p206) target = $region36
      $region35: #{tpu_custom_call.1} parent=5 // pred_region
        %s210 = ssub.s32 %s13, 1
        %s211 = smul.u32 32, %s22
        %p212 = scmp.lt.s32.totalorder %s211, 255
        %s213 = scalar_select %p212, %s211, 255
        %s214 = smul.addr %s213, 4
        %s215 = scalar_lea.vmem %s0, %s214
        %p216 = pneg %p51
        %p217 = pneg %p48
        %p218 = scmp.lt.s32.totalorder %s23, 0
        %s219 = scalar_select %p218, %s23, 0
        %s220 = smul.addr %s219, 4
        %s221 = scalar_lea.vmem %s1, %s220
        %p222 = pneg %p77
        %p223 = pneg %p74
        %p224 = scmp.lt.s32.totalorder %s23, 0
        %s225 = scalar_select %p224, %s23, 0
        %s226 = scalar_lea.vmem %s2, %s225
        %p227 = pneg %p103
        %p228 = pneg %p100
        %p229 = scmp.lt.s32.totalorder %s23, 0
        %s230 = scalar_select %p229, %s23, 0
        %s231 = scalar_lea.vmem %s3, %s230
        %p232 = pneg %p129
        %p233 = pneg %p126
        %p234 = pneg %p157
        %p235 = pneg %p154
        %s236 = sand.u32 %s144, 1
        %s237 = scalar_lea.sflag [#allocation3], %s236
        %s238 = sand.u32 %s144, 1
        %s239 = smul.addr %s238, 256
        %s240 = scalar_lea.vmem [#allocation2], %s239
        %s241 = smul.u32 32, %s22
        %p242 = scmp.lt.s32.totalorder %s241, 255
        %s243 = scalar_select %p242, %s241, 255
        %s244 = smul.addr %s243, 4
        %s245 = scalar_lea.vmem %s0, %s244
        %s246 = smul.u32 32, %s22
        %p247 = scmp.lt.s32.totalorder %s23, 0
        %s248 = scalar_select %p247, %s23, 0
        %s249 = smul.addr %s248, 4
        %s250 = scalar_lea.vmem %s1, %s249
        %p251 = scmp.lt.s32.totalorder %s23, 0
        %s252 = scalar_select %p251, %s23, 0
        %s253 = scalar_lea.vmem %s2, %s252
        %p254 = scmp.lt.s32.totalorder %s23, 0
        %s255 = scalar_select %p254, %s23, 0
        %s256 = scalar_lea.vmem %s3, %s255
        %s257 = smul.u32 32, %s22
        %v259 = vld [vmem:[%s245] sm:$0xf]
        %v260 = vld [vmem:[%s245 + $0x4] sm:$0xf]
        %v261 = vld [vmem:[%s245 + $0x8] sm:$0xf]
        %v262 = vld [vmem:[%s245 + $0xc] sm:$0xf]
        %v263 = vld [vmem:[%s245 + $0x10] sm:$0xf]
        %v264 = vld [vmem:[%s245 + $0x14] sm:$0xf]
        %v265 = vld [vmem:[%s245 + $0x18] sm:$0xf]
        %v266 = vld [vmem:[%s245 + $0x1c] sm:$0xf]
        %v267 = vld [vmem:[%s245 + $0x20] sm:$0xf]
        %v268 = vld [vmem:[%s245 + $0x24] sm:$0xf]
        %v269 = vld [vmem:[%s245 + $0x28] sm:$0xf]
        %v270 = vld [vmem:[%s245 + $0x2c] sm:$0xf]
        %v271 = vld [vmem:[%s245 + $0x30] sm:$0xf]
        %v272 = vld [vmem:[%s245 + $0x34] sm:$0xf]
        %v273 = vld [vmem:[%s245 + $0x38] sm:$0xf]
        %v274 = vld [vmem:[%s245 + $0x3c] sm:$0xf]
        %v275 = vld [vmem:[%s245 + $0x40] sm:$0xf]
        %v276 = vld [vmem:[%s245 + $0x44] sm:$0xf]
        %v277 = vld [vmem:[%s245 + $0x48] sm:$0xf]
        %v278 = vld [vmem:[%s245 + $0x4c] sm:$0xf]
        %v279 = vld [vmem:[%s245 + $0x50] sm:$0xf]
        %v280 = vld [vmem:[%s245 + $0x54] sm:$0xf]
        %v281 = vld [vmem:[%s245 + $0x58] sm:$0xf]
        %v282 = vld [vmem:[%s245 + $0x5c] sm:$0xf]
        %v283 = vld [vmem:[%s245 + $0x60] sm:$0xf]
        %v284 = vld [vmem:[%s245 + $0x64] sm:$0xf]
        %v285 = vld [vmem:[%s245 + $0x68] sm:$0xf]
        %v286 = vld [vmem:[%s245 + $0x6c] sm:$0xf]
        %v287 = vld [vmem:[%s245 + $0x70] sm:$0xf]
        %v288 = vld [vmem:[%s245 + $0x74] sm:$0xf]
        %v289 = vld [vmem:[%s245 + $0x78] sm:$0xf]
        %v290 = vld [vmem:[%s245 + $0x7c] sm:$0xf]
        %v291 = vld [vmem:[%s250] sm:$0xf]
        %v292 = vld [vmem:[%s250 + $0x4] sm:$0xf]
        %v293 = vld [vmem:[%s250 + $0x8] sm:$0xf]
        %v294 = vld [vmem:[%s250 + $0xc] sm:$0x3]
        %v327 = vunpack.c.l.b16 %v259
        %v328 = vunpack.c.l.b16 %v260
        %v329 = vunpack.c.l.b16 %v261
        %v330 = vunpack.c.l.b16 %v262
        %v331 = vunpack.c.l.b16 %v263
        %v332 = vunpack.c.l.b16 %v264
        %v333 = vunpack.c.l.b16 %v265
        %v334 = vunpack.c.l.b16 %v266
        %v335 = vunpack.c.l.b16 %v267
        %v336 = vunpack.c.l.b16 %v268
        %v337 = vunpack.c.l.b16 %v269
        %v338 = vunpack.c.l.b16 %v270
        %v339 = vunpack.c.l.b16 %v271
        %v340 = vunpack.c.l.b16 %v272
        %v341 = vunpack.c.l.b16 %v273
        %v342 = vunpack.c.l.b16 %v274
        %v343 = vunpack.c.l.b16 %v275
        %v344 = vunpack.c.l.b16 %v276
        %v345 = vunpack.c.l.b16 %v277
        %v346 = vunpack.c.l.b16 %v278
        %v347 = vunpack.c.l.b16 %v279
        %v348 = vunpack.c.l.b16 %v280
        %v349 = vunpack.c.l.b16 %v281
        %v350 = vunpack.c.l.b16 %v282
        %v351 = vunpack.c.l.b16 %v283
        %v352 = vunpack.c.l.b16 %v284
        %v353 = vunpack.c.l.b16 %v285
        %v354 = vunpack.c.l.b16 %v286
        %v355 = vunpack.c.l.b16 %v287
        %v356 = vunpack.c.l.b16 %v288
        %v357 = vunpack.c.l.b16 %v289
        %v358 = vunpack.c.l.b16 %v290
        %v359 = vpack.c.b16 %v328, %v327
        %v360 = vpack.c.b16 %v330, %v329
        %v361 = vpack.c.b16 %v332, %v331
        %v362 = vpack.c.b16 %v334, %v333
        %v363 = vpack.c.b16 %v336, %v335
        %v364 = vpack.c.b16 %v338, %v337
        %v365 = vpack.c.b16 %v340, %v339
        %v366 = vpack.c.b16 %v342, %v341
        %v367 = vpack.c.b16 %v344, %v343
        %v368 = vpack.c.b16 %v346, %v345
        %v369 = vpack.c.b16 %v348, %v347
        %v370 = vpack.c.b16 %v350, %v349
        %v371 = vpack.c.b16 %v352, %v351
        %v372 = vpack.c.b16 %v354, %v353
        %v373 = vpack.c.b16 %v356, %v355
        %v374 = vpack.c.b16 %v358, %v357
        %v379 = vunpack.c.l.b16 %v291
        %v380 = vunpack.c.l.b16 %v292
        %v381 = vunpack.c.l.b16 %v293
        %v382 = vunpack.c.l.b16 %v294
        %v383 = vpack.c.b16 %v380, %v379
        %v384 = vpack.c.b16 %v382, %v381
        %vm386 = vcmask 220160
        %v388 = vsel %vm386, %v359, 0
        %v391 = vsel %vm386, %v360, 0
        %v394 = vsel %vm386, %v361, 0
        %v397 = vsel %vm386, %v362, 0
        %v400 = vsel %vm386, %v363, 0
        %v403 = vsel %vm386, %v364, 0
        %v406 = vsel %vm386, %v365, 0
        %v409 = vsel %vm386, %v366, 0
        %v412 = vsel %vm386, %v367, 0
        %v415 = vsel %vm386, %v368, 0
        %v418 = vsel %vm386, %v369, 0
        %v421 = vsel %vm386, %v370, 0
        %v424 = vsel %vm386, %v371, 0
        %v427 = vsel %vm386, %v372, 0
        %v430 = vsel %vm386, %v373, 0
        %v433 = vsel %vm386, %v374, 0
        %vm435 = vcmask 1044480
        %vm436 = vcmask 1045504
        %v437 = vsel %vm435, 4294967295, 65535
        %v438 = vsel %vm436, %v437, 0
        %v440 = vand.u32 %v384, %v438
        %442 = vmatprep.subr.bf16.mxu0 0
        %443 = vmatpush1.bf16.msra.mxu0 0
        %444 = vmatprep.subr.bf16.mxu0 0
        %445 = vmatpush1.bf16.msra.mxu0 0
        %446 = vmatprep.subr.bf16.mxu0 0
        %447 = vmatpush1.bf16.msra.mxu0 0
        %448 = vmatprep.subr.bf16.mxu0 0
        %449 = vmatpush1.bf16.msra.mxu0 0
        %450 = vmatprep.subr.bf16.mxu0 0
        %451 = vmatpush1.bf16.msra.mxu0 0
        %452 = vmatprep.subr.bf16.mxu0 0
        %453 = vmatpush1.bf16.msra.mxu0 0
        %454 = vmatprep.subr.bf16.mxu0 0
        %455 = vmatpush1.bf16.msra.mxu0 %v440
        %456 = vmatprep.subr.bf16.mxu0 0
        %457 = vmatpush1.bf16.msra.mxu0 %v383
        %458 = vmatprep.subr.bf16.mxu0 0
        %459 = vmatpush2.bf16.msra.mxu0 0
        %460 = vmatprep.subr.bf16.mxu0 0
        %461 = vmatpush2.bf16.msra.mxu0 0
        %462 = vmatprep.subr.bf16.mxu0 0
        %463 = vmatpush2.bf16.msra.mxu0 0
        %464 = vmatprep.subr.bf16.mxu0 0
        %465 = vmatpush2.bf16.msra.mxu0 0
        %466 = vmatprep.subr.bf16.mxu0 0
        %467 = vmatpush2.bf16.msra.mxu0 0
        %468 = vmatprep.subr.bf16.mxu0 0
        %469 = vmatpush2.bf16.msra.mxu0 0
        %470 = vmatprep.subr.bf16.mxu0 0
        %471 = vmatpush2.bf16.msra.mxu0 0
        %472 = vmatprep.subr.bf16.mxu0 0
        %473 = vmatpush2.bf16.msra.mxu0 0
        %474 = vmatprep.mubr.bf16.mxu0 0
        %475 = vmatmul.mubr.bf16.gmra.mxu0 %v388
        %v476 = vpop.f32.mrf.mxu0
        %v477 = vadd.f32 0.0, %v476
        %v478 = vpop.f32.mrf.mxu0
        %v479 = vpop.f32.mrf.mxu0
        %v480 = vadd.f32 0.0, %v479
        %v481 = vpop.f32.mrf.mxu0
        %482 = vmatprep.mubr.bf16.mxu0 0
        %483 = vmatmul.mubr.bf16.gmra.mxu0 %v391
        %v484 = vpop.f32.mrf.mxu0
        %v485 = vadd.f32 0.0, %v484
        %v486 = vpop.f32.mrf.mxu0
        %v487 = vpop.f32.mrf.mxu0
        %v488 = vadd.f32 0.0, %v487
        %v489 = vpop.f32.mrf.mxu0
        %490 = vmatprep.mubr.bf16.mxu0 0
        %491 = vmatmul.mubr.bf16.gmra.mxu0 %v394
        %v492 = vpop.f32.mrf.mxu0
        %v493 = vadd.f32 0.0, %v492
        %v494 = vpop.f32.mrf.mxu0
        %v495 = vpop.f32.mrf.mxu0
        %v496 = vadd.f32 0.0, %v495
        %v497 = vpop.f32.mrf.mxu0
        %498 = vmatprep.mubr.bf16.mxu0 0
        %499 = vmatmul.mubr.bf16.gmra.mxu0 %v397
        %v500 = vpop.f32.mrf.mxu0
        %v501 = vadd.f32 0.0, %v500
        %v502 = vpop.f32.mrf.mxu0
        %v503 = vpop.f32.mrf.mxu0
        %v504 = vadd.f32 0.0, %v503
        %v505 = vpop.f32.mrf.mxu0
        %506 = vmatprep.mubr.bf16.mxu0 0
        %507 = vmatmul.mubr.bf16.gmra.mxu0 %v400
        %v508 = vpop.f32.mrf.mxu0
        %v509 = vadd.f32 0.0, %v508
        %v510 = vpop.f32.mrf.mxu0
        %v511 = vpop.f32.mrf.mxu0
        %v512 = vadd.f32 0.0, %v511
        %v513 = vpop.f32.mrf.mxu0
        %514 = vmatprep.mubr.bf16.mxu0 0
        %515 = vmatmul.mubr.bf16.gmra.mxu0 %v403
        %v516 = vpop.f32.mrf.mxu0
        %v517 = vadd.f32 0.0, %v516
        %v518 = vpop.f32.mrf.mxu0
        %v519 = vpop.f32.mrf.mxu0
        %v520 = vadd.f32 0.0, %v519
        %v521 = vpop.f32.mrf.mxu0
        %522 = vmatprep.mubr.bf16.mxu0 0
        %523 = vmatmul.mubr.bf16.gmra.mxu0 %v406
        %v524 = vpop.f32.mrf.mxu0
        %v525 = vadd.f32 0.0, %v524
        %v526 = vpop.f32.mrf.mxu0
        %v527 = vpop.f32.mrf.mxu0
        %v528 = vadd.f32 0.0, %v527
        %v529 = vpop.f32.mrf.mxu0
        %530 = vmatprep.mubr.bf16.mxu0 0
        %531 = vmatmul.mubr.bf16.gmra.mxu0 %v409
        %v532 = vpop.f32.mrf.mxu0
        %v533 = vadd.f32 0.0, %v532
        %v534 = vpop.f32.mrf.mxu0
        %v535 = vpop.f32.mrf.mxu0
        %v536 = vadd.f32 0.0, %v535
        %v537 = vpop.f32.mrf.mxu0
        %538 = vmatprep.mubr.bf16.mxu0 0
        %539 = vmatmul.mubr.bf16.gmra.mxu0 %v412
        %v540 = vpop.f32.mrf.mxu0
        %v541 = vadd.f32 0.0, %v540
        %v542 = vpop.f32.mrf.mxu0
        %v543 = vpop.f32.mrf.mxu0
        %v544 = vadd.f32 0.0, %v543
        %v545 = vpop.f32.mrf.mxu0
        %546 = vmatprep.mubr.bf16.mxu0 0
        %547 = vmatmul.mubr.bf16.gmra.mxu0 %v415
        %v548 = vpop.f32.mrf.mxu0
        %v549 = vadd.f32 0.0, %v548
        %v550 = vpop.f32.mrf.mxu0
        %v551 = vpop.f32.mrf.mxu0
        %v552 = vadd.f32 0.0, %v551
        %v553 = vpop.f32.mrf.mxu0
        %554 = vmatprep.mubr.bf16.mxu0 0
        %555 = vmatmul.mubr.bf16.gmra.mxu0 %v418
        %v556 = vpop.f32.mrf.mxu0
        %v557 = vadd.f32 0.0, %v556
        %v558 = vpop.f32.mrf.mxu0
        %v559 = vpop.f32.mrf.mxu0
        %v560 = vadd.f32 0.0, %v559
        %v561 = vpop.f32.mrf.mxu0
        %562 = vmatprep.mubr.bf16.mxu0 0
        %563 = vmatmul.mubr.bf16.gmra.mxu0 %v421
        %v564 = vpop.f32.mrf.mxu0
        %v565 = vadd.f32 0.0, %v564
        %v566 = vpop.f32.mrf.mxu0
        %v567 = vpop.f32.mrf.mxu0
        %v568 = vadd.f32 0.0, %v567
        %v569 = vpop.f32.mrf.mxu0
        %570 = vmatprep.mubr.bf16.mxu0 0
        %571 = vmatmul.mubr.bf16.gmra.mxu0 %v424
        %v572 = vpop.f32.mrf.mxu0
        %v573 = vadd.f32 0.0, %v572
        %v574 = vpop.f32.mrf.mxu0
        %v575 = vpop.f32.mrf.mxu0
        %v576 = vadd.f32 0.0, %v575
        %v577 = vpop.f32.mrf.mxu0
        %578 = vmatprep.mubr.bf16.mxu0 0
        %579 = vmatmul.mubr.bf16.gmra.mxu0 %v427
        %v580 = vpop.f32.mrf.mxu0
        %v581 = vadd.f32 0.0, %v580
        %v582 = vpop.f32.mrf.mxu0
        %v583 = vpop.f32.mrf.mxu0
        %v584 = vadd.f32 0.0, %v583
        %v585 = vpop.f32.mrf.mxu0
        %586 = vmatprep.mubr.bf16.mxu0 0
        %587 = vmatmul.mubr.bf16.gmra.mxu0 %v430
        %v588 = vpop.f32.mrf.mxu0
        %v589 = vadd.f32 0.0, %v588
        %v590 = vpop.f32.mrf.mxu0
        %v591 = vpop.f32.mrf.mxu0
        %v592 = vadd.f32 0.0, %v591
        %v593 = vpop.f32.mrf.mxu0
        %594 = vmatprep.mubr.bf16.mxu0 0
        %595 = vmatmul.mubr.bf16.gmra.mxu0 %v433
        %v596 = vpop.f32.mrf.mxu0
        %v597 = vadd.f32 0.0, %v596
        %v598 = vpop.f32.mrf.mxu0
        %v599 = vpop.f32.mrf.mxu0
        %v600 = vadd.f32 0.0, %v599
        %v601 = vpop.f32.mrf.mxu0
        %602 = vdwg.mxu0
        %v603 = vld [vmem:[%s253] sm:$0x1]
        %v605 = vlaneseq
        %v606 = vshrl.u32 %v605, 7
        %v607 = vsub.s32 0, %v606
        %v608 = vrot.slane %v603, %v607
        %v610 = vmul.f32 %v477, %v608
        %v611 = vmul.f32 %v480, %v608
        %v612 = vmul.f32 %v485, %v608
        %v613 = vmul.f32 %v488, %v608
        %v614 = vmul.f32 %v493, %v608
        %v615 = vmul.f32 %v496, %v608
        %v616 = vmul.f32 %v501, %v608
        %v617 = vmul.f32 %v504, %v608
        %v618 = vmul.f32 %v509, %v608
        %v619 = vmul.f32 %v512, %v608
        %v620 = vmul.f32 %v517, %v608
        %v621 = vmul.f32 %v520, %v608
        %v622 = vmul.f32 %v525, %v608
        %v623 = vmul.f32 %v528, %v608
        %v624 = vmul.f32 %v533, %v608
        %v625 = vmul.f32 %v536, %v608
        %v626 = vmul.f32 %v541, %v608
        %v627 = vmul.f32 %v544, %v608
        %v628 = vmul.f32 %v549, %v608
        %v629 = vmul.f32 %v552, %v608
        %v630 = vmul.f32 %v557, %v608
        %v631 = vmul.f32 %v560, %v608
        %v632 = vmul.f32 %v565, %v608
        %v633 = vmul.f32 %v568, %v608
        %v634 = vmul.f32 %v573, %v608
        %v635 = vmul.f32 %v576, %v608
        %v636 = vmul.f32 %v581, %v608
        %v637 = vmul.f32 %v584, %v608
        %v638 = vmul.f32 %v589, %v608
        %v639 = vmul.f32 %v592, %v608
        %v640 = vmul.f32 %v597, %v608
        %v641 = vmul.f32 %v600, %v608
        %v642 = vld [vmem:[%s256] sm:$0x1]
        %v644 = vlaneseq
        %v645 = vshrl.u32 %v644, 7
        %v646 = vsub.s32 0, %v645
        %v647 = vrot.slane %v642, %v646
        %v649 = vadd.f32 %v610, %v647
        %v650 = vadd.f32 %v611, %v647
        %v651 = vadd.f32 %v612, %v647
        %v652 = vadd.f32 %v613, %v647
        %v653 = vadd.f32 %v614, %v647
        %v654 = vadd.f32 %v615, %v647
        %v655 = vadd.f32 %v616, %v647
        %v656 = vadd.f32 %v617, %v647
        %v657 = vadd.f32 %v618, %v647
        %v658 = vadd.f32 %v619, %v647
        %v659 = vadd.f32 %v620, %v647
        %v660 = vadd.f32 %v621, %v647
        %v661 = vadd.f32 %v622, %v647
        %v662 = vadd.f32 %v623, %v647
        %v663 = vadd.f32 %v624, %v647
        %v664 = vadd.f32 %v625, %v647
        %v665 = vadd.f32 %v626, %v647
        %v666 = vadd.f32 %v627, %v647
        %v667 = vadd.f32 %v628, %v647
        %v668 = vadd.f32 %v629, %v647
        %v669 = vadd.f32 %v630, %v647
        %v670 = vadd.f32 %v631, %v647
        %v671 = vadd.f32 %v632, %v647
        %v672 = vadd.f32 %v633, %v647
        %v673 = vadd.f32 %v634, %v647
        %v674 = vadd.f32 %v635, %v647
        %v675 = vadd.f32 %v636, %v647
        %v676 = vadd.f32 %v637, %v647
        %v677 = vadd.f32 %v638, %v647
        %v678 = vadd.f32 %v639, %v647
        %v679 = vadd.f32 %v640, %v647
        %v680 = vadd.f32 %v641, %v647
        %v681 = vadd.f32 %v649, 3.0
        %v682 = vadd.f32 %v650, 3.0
        %v683 = vadd.f32 %v651, 3.0
        %v684 = vadd.f32 %v652, 3.0
        %v685 = vadd.f32 %v653, 3.0
        %v686 = vadd.f32 %v654, 3.0
        %v687 = vadd.f32 %v655, 3.0
        %v688 = vadd.f32 %v656, 3.0
        %v689 = vadd.f32 %v657, 3.0
        %v690 = vadd.f32 %v658, 3.0
        %v691 = vadd.f32 %v659, 3.0
        %v692 = vadd.f32 %v660, 3.0
        %v693 = vadd.f32 %v661, 3.0
        %v694 = vadd.f32 %v662, 3.0
        %v695 = vadd.f32 %v663, 3.0
        %v696 = vadd.f32 %v664, 3.0
        %v697 = vadd.f32 %v665, 3.0
        %v698 = vadd.f32 %v666, 3.0
        %v699 = vadd.f32 %v667, 3.0
        %v700 = vadd.f32 %v668, 3.0
        %v701 = vadd.f32 %v669, 3.0
        %v702 = vadd.f32 %v670, 3.0
        %v703 = vadd.f32 %v671, 3.0
        %v704 = vadd.f32 %v672, 3.0
        %v705 = vadd.f32 %v673, 3.0
        %v706 = vadd.f32 %v674, 3.0
        %v707 = vadd.f32 %v675, 3.0
        %v708 = vadd.f32 %v676, 3.0
        %v709 = vadd.f32 %v677, 3.0
        %v710 = vadd.f32 %v678, 3.0
        %v711 = vadd.f32 %v679, 3.0
        %v712 = vadd.f32 %v680, 3.0
        %v713 = vmax.f32 %v681, 0.0
        %v714 = vmax.f32 %v682, 0.0
        %v715 = vmax.f32 %v683, 0.0
        %v716 = vmax.f32 %v684, 0.0
        %v717 = vmax.f32 %v685, 0.0
        %v718 = vmax.f32 %v686, 0.0
        %v719 = vmax.f32 %v687, 0.0
        %v720 = vmax.f32 %v688, 0.0
        %v721 = vmax.f32 %v689, 0.0
        %v722 = vmax.f32 %v690, 0.0
        %v723 = vmax.f32 %v691, 0.0
        %v724 = vmax.f32 %v692, 0.0
        %v725 = vmax.f32 %v693, 0.0
        %v726 = vmax.f32 %v694, 0.0
        %v727 = vmax.f32 %v695, 0.0
        %v728 = vmax.f32 %v696, 0.0
        %v729 = vmax.f32 %v697, 0.0
        %v730 = vmax.f32 %v698, 0.0
        %v731 = vmax.f32 %v699, 0.0
        %v732 = vmax.f32 %v700, 0.0
        %v733 = vmax.f32 %v701, 0.0
        %v734 = vmax.f32 %v702, 0.0
        %v735 = vmax.f32 %v703, 0.0
        %v736 = vmax.f32 %v704, 0.0
        %v737 = vmax.f32 %v705, 0.0
        %v738 = vmax.f32 %v706, 0.0
        %v739 = vmax.f32 %v707, 0.0
        %v740 = vmax.f32 %v708, 0.0
        %v741 = vmax.f32 %v709, 0.0
        %v742 = vmax.f32 %v710, 0.0
        %v743 = vmax.f32 %v711, 0.0
        %v744 = vmax.f32 %v712, 0.0
        %v745 = vmin.f32 %v713, 6.0
        %v746 = vmin.f32 %v714, 6.0
        %v747 = vmin.f32 %v715, 6.0
        %v748 = vmin.f32 %v716, 6.0
        %v749 = vmin.f32 %v717, 6.0
        %v750 = vmin.f32 %v718, 6.0
        %v751 = vmin.f32 %v719, 6.0
        %v752 = vmin.f32 %v720, 6.0
        %v753 = vmin.f32 %v721, 6.0
        %v754 = vmin.f32 %v722, 6.0
        %v755 = vmin.f32 %v723, 6.0
        %v756 = vmin.f32 %v724, 6.0
        %v757 = vmin.f32 %v725, 6.0
        %v758 = vmin.f32 %v726, 6.0
        %v759 = vmin.f32 %v727, 6.0
        %v760 = vmin.f32 %v728, 6.0
        %v761 = vmin.f32 %v729, 6.0
        %v762 = vmin.f32 %v730, 6.0
        %v763 = vmin.f32 %v731, 6.0
        %v764 = vmin.f32 %v732, 6.0
        %v765 = vmin.f32 %v733, 6.0
        %v766 = vmin.f32 %v734, 6.0
        %v767 = vmin.f32 %v735, 6.0
        %v768 = vmin.f32 %v736, 6.0
        %v769 = vmin.f32 %v737, 6.0
        %v770 = vmin.f32 %v738, 6.0
        %v771 = vmin.f32 %v739, 6.0
        %v772 = vmin.f32 %v740, 6.0
        %v773 = vmin.f32 %v741, 6.0
        %v774 = vmin.f32 %v742, 6.0
        %v775 = vmin.f32 %v743, 6.0
        %v776 = vmin.f32 %v744, 6.0
        %v777 = vmul.f32 %v649, %v745
        %v778 = vmul.f32 %v650, %v746
        %v779 = vmul.f32 %v651, %v747
        %v780 = vmul.f32 %v652, %v748
        %v781 = vmul.f32 %v653, %v749
        %v782 = vmul.f32 %v654, %v750
        %v783 = vmul.f32 %v655, %v751
        %v784 = vmul.f32 %v656, %v752
        %v785 = vmul.f32 %v657, %v753
        %v786 = vmul.f32 %v658, %v754
        %v787 = vmul.f32 %v659, %v755
        %v788 = vmul.f32 %v660, %v756
        %v789 = vmul.f32 %v661, %v757
        %v790 = vmul.f32 %v662, %v758
        %v791 = vmul.f32 %v663, %v759
        %v792 = vmul.f32 %v664, %v760
        %v793 = vmul.f32 %v665, %v761
        %v794 = vmul.f32 %v666, %v762
        %v795 = vmul.f32 %v667, %v763
        %v796 = vmul.f32 %v668, %v764
        %v797 = vmul.f32 %v669, %v765
        %v798 = vmul.f32 %v670, %v766
        %v799 = vmul.f32 %v671, %v767
        %v800 = vmul.f32 %v672, %v768
        %v801 = vmul.f32 %v673, %v769
        %v802 = vmul.f32 %v674, %v770
        %v803 = vmul.f32 %v675, %v771
        %v804 = vmul.f32 %v676, %v772
        %v805 = vmul.f32 %v677, %v773
        %v806 = vmul.f32 %v678, %v774
        %v807 = vmul.f32 %v679, %v775
        %v808 = vmul.f32 %v680, %v776
        %v809 = vmul.f32 %v777, 0.16666667
        %v810 = vmul.f32 %v778, 0.16666667
        %v811 = vmul.f32 %v779, 0.16666667
        %v812 = vmul.f32 %v780, 0.16666667
        %v813 = vmul.f32 %v781, 0.16666667
        %v814 = vmul.f32 %v782, 0.16666667
        %v815 = vmul.f32 %v783, 0.16666667
        %v816 = vmul.f32 %v784, 0.16666667
        %v817 = vmul.f32 %v785, 0.16666667
        %v818 = vmul.f32 %v786, 0.16666667
        %v819 = vmul.f32 %v787, 0.16666667
        %v820 = vmul.f32 %v788, 0.16666667
        %v821 = vmul.f32 %v789, 0.16666667
        %v822 = vmul.f32 %v790, 0.16666667
        %v823 = vmul.f32 %v791, 0.16666667
        %v824 = vmul.f32 %v792, 0.16666667
        %v825 = vmul.f32 %v793, 0.16666667
        %v826 = vmul.f32 %v794, 0.16666667
        %v827 = vmul.f32 %v795, 0.16666667
        %v828 = vmul.f32 %v796, 0.16666667
        %v829 = vmul.f32 %v797, 0.16666667
        %v830 = vmul.f32 %v798, 0.16666667
        %v831 = vmul.f32 %v799, 0.16666667
        %v832 = vmul.f32 %v800, 0.16666667
        %v833 = vmul.f32 %v801, 0.16666667
        %v834 = vmul.f32 %v802, 0.16666667
        %v835 = vmul.f32 %v803, 0.16666667
        %v836 = vmul.f32 %v804, 0.16666667
        %v837 = vmul.f32 %v805, 0.16666667
        %v838 = vmul.f32 %v806, 0.16666667
        %v839 = vmul.f32 %v807, 0.16666667
        %v840 = vmul.f32 %v808, 0.16666667
        %841 = vst [vmem:[%s240] sm:$0xff] %v809
        %842 = vst [vmem:[%s240 + $0x8] sm:$0xff] %v810
        %843 = vst [vmem:[%s240 + $0x10] sm:$0xff] %v811
        %844 = vst [vmem:[%s240 + $0x18] sm:$0xff] %v812
        %845 = vst [vmem:[%s240 + $0x20] sm:$0xff] %v813
        %846 = vst [vmem:[%s240 + $0x28] sm:$0xff] %v814
        %847 = vst [vmem:[%s240 + $0x30] sm:$0xff] %v815
        %848 = vst [vmem:[%s240 + $0x38] sm:$0xff] %v816
        %849 = vst [vmem:[%s240 + $0x40] sm:$0xff] %v817
        %850 = vst [vmem:[%s240 + $0x48] sm:$0xff] %v818
        %851 = vst [vmem:[%s240 + $0x50] sm:$0xff] %v819
        %852 = vst [vmem:[%s240 + $0x58] sm:$0xff] %v820
        %853 = vst [vmem:[%s240 + $0x60] sm:$0xff] %v821
        %854 = vst [vmem:[%s240 + $0x68] sm:$0xff] %v822
        %855 = vst [vmem:[%s240 + $0x70] sm:$0xff] %v823
        %856 = vst [vmem:[%s240 + $0x78] sm:$0xff] %v824
        %857 = vst [vmem:[%s240 + $0x80] sm:$0xff] %v825
        %858 = vst [vmem:[%s240 + $0x88] sm:$0xff] %v826
        %859 = vst [vmem:[%s240 + $0x90] sm:$0xff] %v827
        %860 = vst [vmem:[%s240 + $0x98] sm:$0xff] %v828
        %861 = vst [vmem:[%s240 + $0xa0] sm:$0xff] %v829
        %862 = vst [vmem:[%s240 + $0xa8] sm:$0xff] %v830
        %863 = vst [vmem:[%s240 + $0xb0] sm:$0xff] %v831
        %864 = vst [vmem:[%s240 + $0xb8] sm:$0xff] %v832
        %865 = vst [vmem:[%s240 + $0xc0] sm:$0xff] %v833
        %866 = vst [vmem:[%s240 + $0xc8] sm:$0xff] %v834
        %867 = vst [vmem:[%s240 + $0xd0] sm:$0xff] %v835
        %868 = vst [vmem:[%s240 + $0xd8] sm:$0xff] %v836
        %869 = vst [vmem:[%s240 + $0xe0] sm:$0xff] %v837
        %870 = vst [vmem:[%s240 + $0xe8] sm:$0xff] %v838
        %871 = vst [vmem:[%s240 + $0xf0] sm:$0xff] %v839
        %872 = vst [vmem:[%s240 + $0xf8] sm:$0xff] %v840
        %s873 = sand.u32 %s144, 1
        %s874 = scalar_lea.sflag [#allocation3], %s873
        %s875 = sand.u32 %s144, 1
        %s876 = smul.addr %s875, 256
        %s877 = scalar_lea.vmem [#allocation2], %s876
        // Predicated region
        $region37: #{tpu_custom_call.1} parent=35 // pred_check
          %p878 = pneg %p154
        $region38: #{tpu_custom_call.1} parent=35 // pred_check_branch
          %880 = sbr.rel (%p878) target = $region40
        $region39: #{tpu_custom_call.1} parent=35 // pred_region
          %s881 = smul.u32 32, %s22
          %s883 = ssub.s32 4096, 4096
          %884 = vsyncadd %s874, %s883
          %s885 = sadd.s32 %s23, %s881
          %s886 = smul.addr %s885, 128
          %s887 = scalar_lea.hbm %s4, %s886
          %s888 = sshll.u32 %s877, 4
          %s889 = int_to_ptr.vmem [resolvable:$true] %s888
          %894 = dma.vmem_to_hbm [thread:$0]  %s889, 4096, %s887, %s874, 128, 128, 8
        $region40: #{tpu_custom_call.1} parent=35 // pred_fallthru
          _
      $region36: #{tpu_custom_call.1} parent=5 // pred_fallthru
        _
      %p895 = scmp.le.s32.totalorder 2, %s13
      // Predicated region
      $region41: #{tpu_custom_call.1} parent=5 // pred_check
        %p896 = pneg %p895
      $region42: #{tpu_custom_call.1} parent=5 // pred_check_branch
        %898 = sbr.rel (%p896) target = $region44
      $region43: #{tpu_custom_call.1} parent=5 // pred_region
        %s899 = ssub.s32 %s13, 2
        // Predicated region
        $region45: #{tpu_custom_call.1} parent=43 // pred_check
          %p900 = pneg %p160
        $region46: #{tpu_custom_call.1} parent=43 // pred_check_branch
          %902 = sbr.rel (%p900) target = $region48
        $region47: #{tpu_custom_call.1} parent=43 // pred_region
          %s903 = sand.u32 %s145, 1
          %s904 = scalar_lea.sflag [#allocation3], %s903
          %s905 = sand.u32 %s145, 1
          %s906 = smul.addr %s905, 256
          %s907 = scalar_lea.vmem [#allocation2], %s906
          %908 = dma.done %s904, 4096
        $region48: #{tpu_custom_call.1} parent=43 // pred_fallthru
          _
      $region44: #{tpu_custom_call.1} parent=5 // pred_fallthru
        _
    $region6: #{tpu_custom_call.1} parent=1 // loop_footer
      %s17 = sadd.s32 1, %s13
    $region7: #{tpu_custom_call.1} parent=1 // loop_footer_branch
      %12 = sbr.rel target = $region3
    $region8: #{tpu_custom_call.1} parent=1 // loop_exit
      _
    %909 = vsyncpa [#allocation3], 1
    %s910 = scalar_lea.sflag [#allocation3], 1
    %911 = vsyncpa %s910, 1

</llo_original>
